<compile_context>
chip_gen: v7x
topology: tpu7x:2x2x1
jax: 0.10.0
libtpu: 0.0.40
codegen_flags: <defaults>
</compile_context>

<pallas_src>
import functools
import math

import jax
import jax.numpy as jnp
from jax.experimental import pallas as pl
from jax.experimental.pallas import tpu as pltpu

MAX_ROW_TILE = 2048       # per-step work is tiny; big tiles amortize the ~0.35us/step overhead
USE_BF16_MATMUL = True    # bf16 MXU operands, fp32 accumulation (elementwise math stays fp32)


def _round_up(x, m):
    return ((x + m - 1) // m) * m


# ----------------------------------------------------------------------------
# Pallas kernel: the whole AngleResnet forward for one row tile
# ----------------------------------------------------------------------------
def _angle_resnet_kernel(x_ref, w_in_ref, b_in_ref, wb_ref, bb_ref,
                         w_out_ref, b_out_ref, pair_ref, out_ref,
                         *, no_blocks, eps, compute_dtype):
    # Weights arrive already in compute_dtype (pre-cast in the wrapper);
    # only the activation is cast here. Accumulation is always fp32.
    def mm(a, w):
        return jnp.dot(a.astype(compute_dtype), w,
                       preferred_element_type=jnp.float32)

    # s = linear_in(relu(x))
    s = jnp.maximum(x_ref[...], 0)
    s = mm(s, w_in_ref[...]) + b_in_ref[...]

    # AngleResnetBlocks (statically unrolled; weights stacked as [2*no_blocks, c, c])
    for i in range(no_blocks):
        a = jnp.maximum(s, 0.0)
        a = mm(a, wb_ref[2 * i]) + bb_ref[2 * i]
        a = jnp.maximum(a, 0.0)
        a = mm(a, wb_ref[2 * i + 1]) + bb_ref[2 * i + 1]
        s = s + a

    # y = linear_out(relu(s))
    s = jnp.maximum(s, 0.0)
    y = mm(s, w_out_ref[...]) + b_out_ref[...]          # fp32, [rows, 2*no_angles]

    # per-(cos, sin) pair L2 normalization: columns (2i, 2i+1) share one denominator.
    # pair_ref is a hoisted constant block-diagonal matrix (no per-step iota rebuild,
    # no in-kernel reshape / lane shuffle).
    pair_sum = jnp.dot(y * y, pair_ref[...], preferred_element_type=jnp.float32)
    inv = jax.lax.rsqrt(jnp.maximum(pair_sum, eps))      # clamp(sum, min=eps) then rsqrt

    two_a = y.shape[-1]
    out_ref[:, :two_a] = y                               # unnormalized
    out_ref[:, two_a:] = y * inv                         # normalized


# ----------------------------------------------------------------------------
# wrapper
# ----------------------------------------------------------------------------
def angle_resnet_forward(params, s, *, no_rigids, eps):
    """s: [B, N_rigid, c_in] -> (normalized [B, N_res, no_angles, 2], unnormalized)."""
    B, n_rigid, c_in = s.shape
    n_res = n_rigid // no_rigids
    d_in = c_in * no_rigids

    w_in, b_in = params["w_in"], params["b_in"]
    w_blocks, b_blocks = params["w_blocks"], params["b_blocks"]
    w_out, b_out = params["w_out"], params["b_out"]
    c_hidden = w_in.shape[1]
    two_a = w_out.shape[1]
    no_blocks = w_blocks.shape[0] // 2

    compute_dtype = jnp.bfloat16 if USE_BF16_MATMUL else jnp.float32
    # Pre-cast weights once (outside the kernel) -> no per-step VPU casts, half the
    # weight DMA / VMEM footprint.
    w_in_c = w_in.astype(compute_dtype)
    w_blocks_c = w_blocks.astype(compute_dtype)
    w_out_c = w_out.astype(compute_dtype)

    # Free view-reshape (row-major, matches torch.reshape). No astype, no padding:
    # the ragged tail is handled by a cdiv grid + clipped output writeback.
    x = s.reshape(B * n_res, d_in)
    m = x.shape[0]

    # Row tile: as large as possible (amortize per-step overhead), but keep >= 2
    # balanced tiles whenever there is enough work so v7x's two TensorCores both
    # get a share of the "parallel" row axis.
    min_tiles = 2 if m >= 16 else 1
    num_tiles = max(pl.cdiv(m, MAX_ROW_TILE), min_tiles)
    row_tile = _round_up(pl.cdiv(m, num_tiles), 8)
    grid = pl.cdiv(m, row_tile)

    # Hoisted block-diagonal pair-sum matrix: pair_mat[i, j] = (i//2 == j//2).
    idx = jnp.arange(two_a)
    pair_mat = (idx[:, None] // 2 == idx[None, :] // 2).astype(jnp.float32)

    kernel = functools.partial(_angle_resnet_kernel, no_blocks=no_blocks,
                               eps=eps, compute_dtype=compute_dtype)

    packed = pl.pallas_call(
        kernel,
        out_shape=jax.ShapeDtypeStruct((m, 2 * two_a), jnp.float32),
        grid=(grid,),
        in_specs=[
            pl.BlockSpec((row_tile, d_in), lambda i: (i, 0)),
            pl.BlockSpec((d_in, c_hidden), lambda i: (0, 0)),
            pl.BlockSpec((1, c_hidden), lambda i: (0, 0)),
            pl.BlockSpec((2 * no_blocks, c_hidden, c_hidden), lambda i: (0, 0, 0)),
            pl.BlockSpec((2 * no_blocks, 1, c_hidden), lambda i: (0, 0, 0)),
            pl.BlockSpec((c_hidden, two_a), lambda i: (0, 0)),
            pl.BlockSpec((1, two_a), lambda i: (0, 0)),
            pl.BlockSpec((two_a, two_a), lambda i: (0, 0)),
        ],
        out_specs=pl.BlockSpec((row_tile, 2 * two_a), lambda i: (i, 0)),
        compiler_params=pltpu.CompilerParams(
            dimension_semantics=("parallel",),
            vmem_limit_bytes=32 * 1024 * 1024),
    )(x, w_in_c, b_in.reshape(1, -1), w_blocks_c,
      b_blocks.reshape(2 * no_blocks, 1, -1), w_out_c, b_out.reshape(1, -1),
      pair_mat)

    unnorm = packed[:, :two_a].reshape(B, n_res, two_a // 2, 2)
    norm = packed[:, two_a:].reshape(B, n_res, two_a // 2, 2)
    return norm, unnorm


# ----------------------------------------------------------------------------
# pure-JAX fp32 reference (for verification)
# ----------------------------------------------------------------------------
def angle_resnet_ref(params, s, *, no_rigids, eps):
    B, n_rigid, c_in = s.shape
    n_res = n_rigid // no_rigids
    x = s.reshape(B, n_res, c_in * no_rigids)
    h = jax.nn.relu(x) @ params["w_in"] + params["b_in"]
    no_blocks = params["w_blocks"].shape[0] // 2
    for i in range(no_blocks):
        a = jax.nn.relu(h)
        a = a @ params["w_blocks"][2 * i] + params["b_blocks"][2 * i]
        a = jax.nn.relu(a)
        a = a @ params["w_blocks"][2 * i + 1] + params["b_blocks"][2 * i + 1]
        h = h + a
    y = jax.nn.relu(h) @ params["w_out"] + params["b_out"]
    y = y.reshape(B, n_res, -1, 2)
    denom = jnp.sqrt(jnp.maximum(jnp.sum(y * y, axis=-1, keepdims=True), eps))
    return y / denom, y


# ----------------------------------------------------------------------------
# deterministic parameter init (W stored as [in, out]; y = x @ W + b)
# ----------------------------------------------------------------------------
def init_params(key, c_in, c_hidden, no_blocks, no_angles, no_rigids):
    keys = list(jax.random.split(key, 4 * no_blocks + 8))
    kit = iter(keys)

    def dense(din, dout):
        return jax.random.normal(next(kit), (din, dout), jnp.float32) / math.sqrt(din)

    def bias(d):
        return 0.1 * jax.random.normal(next(kit), (d,), jnp.float32)

    d_in = c_in * no_rigids
    w_blocks = jnp.stack([dense(c_hidden, c_hidden) for _ in range(2 * no_blocks)])
    b_blocks = jnp.stack([bias(c_hidden) for _ in range(2 * no_blocks)])
    return dict(
        w_in=dense(d_in, c_hidden), b_in=bias(c_hidden),
        w_blocks=w_blocks, b_blocks=b_blocks,
        w_out=dense(c_hidden, no_angles * 2), b_out=bias(no_angles * 2),
    )


# ----------------------------------------------------------------------------
# demo
# ----------------------------------------------------------------------------
if __name__ == "__main__":
    c_in, c_hidden, no_blocks, no_angles, no_rigids = 32, 128, 2, 4, 5
    eps = 1e-8
    B, n_rigid = 2, 40   # N_rigid must be a multiple of no_rigids -> N_res = 8

    key = jax.random.PRNGKey(0)
    k_par, k_s = jax.random.split(key)
    params = init_params(k_par, c_in, c_hidden, no_blocks, no_angles, no_rigids)
    s = jax.random.normal(k_s, (B, n_rigid, c_in), jnp.float32)

    fwd = jax.jit(functools.partial(angle_resnet_forward, no_rigids=no_rigids, eps=eps))
    norm, unnorm = fwd(params, s)
    norm, unnorm = jax.block_until_ready((norm, unnorm))

    assert norm.shape == (B, n_rigid // no_rigids, no_angles, 2)
    assert unnorm.shape == norm.shape
    assert bool(jnp.all(jnp.isfinite(norm))) and bool(jnp.all(jnp.isfinite(unnorm)))

    # compare against the fp32 JAX reference (loose tol: kernel uses bf16 MXU operands)
    ref_norm, ref_unnorm = angle_resnet_ref(params, s, no_rigids=no_rigids, eps=eps)
    err_un = float(jnp.max(jnp.abs(unnorm - ref_unnorm)))
    assert err_un < 0.15, f"unnormalized output mismatch: {err_un}"

    # normalized output must be consistent with the kernel's own unnormalized one
    pair = jnp.sum(unnorm * unnorm, axis=-1, keepdims=True)
    renorm = unnorm * jax.lax.rsqrt(jnp.maximum(pair, eps))
    err_n = float(jnp.max(jnp.abs(norm - renorm)))
    assert err_n < 1e-4, f"normalization mismatch: {err_n}"

    print("KERNEL_OK")
</pallas_src>

<mosaic_0001>
module attributes {stable_mosaic.version = 11 : i64} {
  func.func @_angle_resnet_kernel(%arg0: i32, %arg1: memref<8x160xf32, #tpu.memory_space<vmem>>, %arg2: memref<160x128xbf16, #tpu.memory_space<vmem>>, %arg3: memref<1x128xf32, #tpu.memory_space<vmem>>, %arg4: memref<4x128x128xbf16, #tpu.memory_space<vmem>>, %arg5: memref<4x1x128xf32, #tpu.memory_space<vmem>>, %arg6: memref<128x8xbf16, #tpu.memory_space<vmem>>, %arg7: memref<1x8xf32, #tpu.memory_space<vmem>>, %arg8: memref<8x8xf32, #tpu.memory_space<vmem>>, %arg9: memref<8x16xf32, #tpu.memory_space<vmem>>) attributes {dimension_semantics = [#tpu.dimension_semantics<parallel>], iteration_bounds = array<i64: 2>, scalar_prefetch = 0 : i64, scratch_operands = 0 : i64, tpu.core_type = #tpu.core_type<tc>, window_params = [{transform_indices = @transform_0, window_bounds = array<i64: 8, 160>}, {pipeline_mode = #tpu.pipeline_mode<synchronous>, transform_indices = @transform_1, window_bounds = array<i64: 160, 128>}, {pipeline_mode = #tpu.pipeline_mode<synchronous>, transform_indices = @transform_2, window_bounds = array<i64: 1, 128>}, {pipeline_mode = #tpu.pipeline_mode<synchronous>, transform_indices = @transform_3, window_bounds = array<i64: 4, 128, 128>}, {pipeline_mode = #tpu.pipeline_mode<synchronous>, transform_indices = @transform_4, window_bounds = array<i64: 4, 1, 128>}, {pipeline_mode = #tpu.pipeline_mode<synchronous>, transform_indices = @transform_5, window_bounds = array<i64: 128, 8>}, {pipeline_mode = #tpu.pipeline_mode<synchronous>, transform_indices = @transform_6, window_bounds = array<i64: 1, 8>}, {pipeline_mode = #tpu.pipeline_mode<synchronous>, transform_indices = @transform_7, window_bounds = array<i64: 8, 8>}, {transform_indices = @transform_8, window_bounds = array<i64: 8, 16>}]} {
    %c0 = arith.constant 0 : index
    %c0_0 = arith.constant 0 : index
    %0 = vector.load %arg1[%c0, %c0_0] : memref<8x160xf32, #tpu.memory_space<vmem>>, vector<8x160xf32>
    %cst = arith.constant 0.000000e+00 : f32
    %1 = vector.broadcast %cst : f32 to vector<8x160xf32>
    %2 = arith.maximumf %0, %1 : vector<8x160xf32>
    %c0_1 = arith.constant 0 : index
    %c0_2 = arith.constant 0 : index
    %3 = vector.load %arg2[%c0_1, %c0_2] : memref<160x128xbf16, #tpu.memory_space<vmem>>, vector<160x128xbf16>
    %4 = arith.truncf %2 : vector<8x160xf32> to vector<8x160xbf16>
    %cst_3 = arith.constant dense<0.000000e+00> : vector<8x128xf32>
    %5 = tpu.matmul %4, %3, %cst_3 {dimension_numbers = #tpu.dot_dimension_numbers<[1], [0], [0], [1], [0, 0, 1, 1], [], []>} : vector<8x160xbf16>, vector<160x128xbf16>, vector<8x128xf32> -> vector<8x128xf32>
    %c0_4 = arith.constant 0 : index
    %c0_5 = arith.constant 0 : index
    %6 = vector.load %arg3[%c0_4, %c0_5] : memref<1x128xf32, #tpu.memory_space<vmem>>, vector<1x128xf32>
    %7 = vector.broadcast %6 : vector<1x128xf32> to vector<8x128xf32>
    %8 = arith.addf %5, %7 : vector<8x128xf32>
    %cst_6 = arith.constant 0.000000e+00 : f32
    %9 = vector.broadcast %cst_6 : f32 to vector<8x128xf32>
    %10 = arith.maximumf %8, %9 : vector<8x128xf32>
    %c0_7 = arith.constant 0 : index
    %c0_8 = arith.constant 0 : index
    %c0_9 = arith.constant 0 : index
    %11 = vector.load %arg4[%c0_7, %c0_8, %c0_9] : memref<4x128x128xbf16, #tpu.memory_space<vmem>>, vector<1x128x128xbf16>
    %12 = vector.shape_cast %11 : vector<1x128x128xbf16> to vector<128x128xbf16>
    %13 = arith.truncf %10 : vector<8x128xf32> to vector<8x128xbf16>
    %cst_10 = arith.constant dense<0.000000e+00> : vector<8x128xf32>
    %14 = tpu.matmul %13, %12, %cst_10 {dimension_numbers = #tpu.dot_dimension_numbers<[1], [0], [0], [1], [0, 0, 1, 1], [], []>} : vector<8x128xbf16>, vector<128x128xbf16>, vector<8x128xf32> -> vector<8x128xf32>
    %c0_11 = arith.constant 0 : index
    %c0_12 = arith.constant 0 : index
    %c0_13 = arith.constant 0 : index
    %15 = vector.load %arg5[%c0_11, %c0_12, %c0_13] : memref<4x1x128xf32, #tpu.memory_space<vmem>>, vector<1x1x128xf32>
    %16 = vector.shape_cast %15 : vector<1x1x128xf32> to vector<1x128xf32>
    %17 = vector.broadcast %16 : vector<1x128xf32> to vector<8x128xf32>
    %18 = arith.addf %14, %17 : vector<8x128xf32>
    %cst_14 = arith.constant 0.000000e+00 : f32
    %19 = vector.broadcast %cst_14 : f32 to vector<8x128xf32>
    %20 = arith.maximumf %18, %19 : vector<8x128xf32>
    %c1 = arith.constant 1 : index
    %c0_15 = arith.constant 0 : index
    %c0_16 = arith.constant 0 : index
    %21 = vector.load %arg4[%c1, %c0_15, %c0_16] : memref<4x128x128xbf16, #tpu.memory_space<vmem>>, vector<1x128x128xbf16>
    %22 = vector.shape_cast %21 : vector<1x128x128xbf16> to vector<128x128xbf16>
    %23 = arith.truncf %20 : vector<8x128xf32> to vector<8x128xbf16>
    %cst_17 = arith.constant dense<0.000000e+00> : vector<8x128xf32>
    %24 = tpu.matmul %23, %22, %cst_17 {dimension_numbers = #tpu.dot_dimension_numbers<[1], [0], [0], [1], [0, 0, 1, 1], [], []>} : vector<8x128xbf16>, vector<128x128xbf16>, vector<8x128xf32> -> vector<8x128xf32>
    %c1_18 = arith.constant 1 : index
    %c0_19 = arith.constant 0 : index
    %c0_20 = arith.constant 0 : index
    %25 = vector.load %arg5[%c1_18, %c0_19, %c0_20] : memref<4x1x128xf32, #tpu.memory_space<vmem>>, vector<1x1x128xf32>
    %26 = vector.shape_cast %25 : vector<1x1x128xf32> to vector<1x128xf32>
    %27 = vector.broadcast %26 : vector<1x128xf32> to vector<8x128xf32>
    %28 = arith.addf %24, %27 : vector<8x128xf32>
    %29 = arith.addf %8, %28 : vector<8x128xf32>
    %cst_21 = arith.constant 0.000000e+00 : f32
    %30 = vector.broadcast %cst_21 : f32 to vector<8x128xf32>
    %31 = arith.maximumf %29, %30 : vector<8x128xf32>
    %c2 = arith.constant 2 : index
    %c0_22 = arith.constant 0 : index
    %c0_23 = arith.constant 0 : index
    %32 = vector.load %arg4[%c2, %c0_22, %c0_23] : memref<4x128x128xbf16, #tpu.memory_space<vmem>>, vector<1x128x128xbf16>
    %33 = vector.shape_cast %32 : vector<1x128x128xbf16> to vector<128x128xbf16>
    %34 = arith.truncf %31 : vector<8x128xf32> to vector<8x128xbf16>
    %cst_24 = arith.constant dense<0.000000e+00> : vector<8x128xf32>
    %35 = tpu.matmul %34, %33, %cst_24 {dimension_numbers = #tpu.dot_dimension_numbers<[1], [0], [0], [1], [0, 0, 1, 1], [], []>} : vector<8x128xbf16>, vector<128x128xbf16>, vector<8x128xf32> -> vector<8x128xf32>
    %c2_25 = arith.constant 2 : index
    %c0_26 = arith.constant 0 : index
    %c0_27 = arith.constant 0 : index
    %36 = vector.load %arg5[%c2_25, %c0_26, %c0_27] : memref<4x1x128xf32, #tpu.memory_space<vmem>>, vector<1x1x128xf32>
    %37 = vector.shape_cast %36 : vector<1x1x128xf32> to vector<1x128xf32>
    %38 = vector.broadcast %37 : vector<1x128xf32> to vector<8x128xf32>
    %39 = arith.addf %35, %38 : vector<8x128xf32>
    %cst_28 = arith.constant 0.000000e+00 : f32
    %40 = vector.broadcast %cst_28 : f32 to vector<8x128xf32>
    %41 = arith.maximumf %39, %40 : vector<8x128xf32>
    %c3 = arith.constant 3 : index
    %c0_29 = arith.constant 0 : index
    %c0_30 = arith.constant 0 : index
    %42 = vector.load %arg4[%c3, %c0_29, %c0_30] : memref<4x128x128xbf16, #tpu.memory_space<vmem>>, vector<1x128x128xbf16>
    %43 = vector.shape_cast %42 : vector<1x128x128xbf16> to vector<128x128xbf16>
    %44 = arith.truncf %41 : vector<8x128xf32> to vector<8x128xbf16>
    %cst_31 = arith.constant dense<0.000000e+00> : vector<8x128xf32>
    %45 = tpu.matmul %44, %43, %cst_31 {dimension_numbers = #tpu.dot_dimension_numbers<[1], [0], [0], [1], [0, 0, 1, 1], [], []>} : vector<8x128xbf16>, vector<128x128xbf16>, vector<8x128xf32> -> vector<8x128xf32>
    %c3_32 = arith.constant 3 : index
    %c0_33 = arith.constant 0 : index
    %c0_34 = arith.constant 0 : index
    %46 = vector.load %arg5[%c3_32, %c0_33, %c0_34] : memref<4x1x128xf32, #tpu.memory_space<vmem>>, vector<1x1x128xf32>
    %47 = vector.shape_cast %46 : vector<1x1x128xf32> to vector<1x128xf32>
    %48 = vector.broadcast %47 : vector<1x128xf32> to vector<8x128xf32>
    %49 = arith.addf %45, %48 : vector<8x128xf32>
    %50 = arith.addf %29, %49 : vector<8x128xf32>
    %cst_35 = arith.constant 0.000000e+00 : f32
    %51 = vector.broadcast %cst_35 : f32 to vector<8x128xf32>
    %52 = arith.maximumf %50, %51 : vector<8x128xf32>
    %c0_36 = arith.constant 0 : index
    %c0_37 = arith.constant 0 : index
    %53 = vector.load %arg6[%c0_36, %c0_37] : memref<128x8xbf16, #tpu.memory_space<vmem>>, vector<128x8xbf16>
    %54 = arith.truncf %52 : vector<8x128xf32> to vector<8x128xbf16>
    %cst_38 = arith.constant dense<0.000000e+00> : vector<8x8xf32>
    %55 = tpu.matmul %54, %53, %cst_38 {dimension_numbers = #tpu.dot_dimension_numbers<[1], [0], [0], [1], [0, 0, 1, 1], [], []>} : vector<8x128xbf16>, vector<128x8xbf16>, vector<8x8xf32> -> vector<8x8xf32>
    %c0_39 = arith.constant 0 : index
    %c0_40 = arith.constant 0 : index
    %56 = vector.load %arg7[%c0_39, %c0_40] : memref<1x8xf32, #tpu.memory_space<vmem>>, vector<1x8xf32>
    %57 = vector.broadcast %56 : vector<1x8xf32> to vector<8x8xf32>
    %58 = arith.addf %55, %57 : vector<8x8xf32>
    %59 = arith.mulf %58, %58 : vector<8x8xf32>
    %c0_41 = arith.constant 0 : index
    %c0_42 = arith.constant 0 : index
    %60 = vector.load %arg8[%c0_41, %c0_42] : memref<8x8xf32, #tpu.memory_space<vmem>>, vector<8x8xf32>
    %cst_43 = arith.constant dense<0.000000e+00> : vector<8x8xf32>
    %61 = tpu.matmul %59, %60, %cst_43 {dimension_numbers = #tpu.dot_dimension_numbers<[1], [0], [0], [1], [0, 0, 1, 1], [], []>} : vector<8x8xf32>, vector<8x8xf32>, vector<8x8xf32> -> vector<8x8xf32>
    %cst_44 = arith.constant 9.99999993E-9 : f32
    %62 = vector.broadcast %cst_44 : f32 to vector<8x8xf32>
    %63 = arith.maximumf %61, %62 : vector<8x8xf32>
    %64 = math.rsqrt %63 : vector<8x8xf32>
    %c0_45 = arith.constant 0 : index
    %c0_46 = arith.constant 0 : index
    %65 = vector.load %arg9[%c0_45, %c0_46] : memref<8x16xf32, #tpu.memory_space<vmem>>, vector<8x8xf32>
    tpu.vector_store %arg9[%c0_45, %c0_46], %58 {strides = array<i32>} : memref<8x16xf32, #tpu.memory_space<vmem>>, vector<8x8xf32>,
    %66 = arith.mulf %58, %64 : vector<8x8xf32>
    %c0_47 = arith.constant 0 : index
    %c8 = arith.constant 8 : index
    %67 = vector.load %arg9[%c0_47, %c8] : memref<8x16xf32, #tpu.memory_space<vmem>>, vector<8x8xf32>
    tpu.vector_store %arg9[%c0_47, %c8], %66 {strides = array<i32>} : memref<8x16xf32, #tpu.memory_space<vmem>>, vector<8x8xf32>,
    return
  }
  func.func @transform_0(%arg0: i32) -> (i32, i32) {
    %c0_i32 = arith.constant 0 : i32
    %c0_i32_0 = arith.constant 0 : i32
    return %arg0, %c0_i32 : i32, i32
  }
  func.func @transform_1(%arg0: i32) -> (i32, i32) {
    %c0_i32 = arith.constant 0 : i32
    %c0_i32_0 = arith.constant 0 : i32
    %c0_i32_1 = arith.constant 0 : i32
    return %c0_i32, %c0_i32_0 : i32, i32
  }
  func.func @transform_2(%arg0: i32) -> (i32, i32) {
    %c0_i32 = arith.constant 0 : i32
    %c0_i32_0 = arith.constant 0 : i32
    %c0_i32_1 = arith.constant 0 : i32
    return %c0_i32, %c0_i32_0 : i32, i32
  }
  func.func @transform_3(%arg0: i32) -> (i32, i32, i32) {
    %c0_i32 = arith.constant 0 : i32
    %c0_i32_0 = arith.constant 0 : i32
    %c0_i32_1 = arith.constant 0 : i32
    %c0_i32_2 = arith.constant 0 : i32
    return %c0_i32, %c0_i32_0, %c0_i32_1 : i32, i32, i32
  }
  func.func @transform_4(%arg0: i32) -> (i32, i32, i32) {
    %c0_i32 = arith.constant 0 : i32
    %c0_i32_0 = arith.constant 0 : i32
    %c0_i32_1 = arith.constant 0 : i32
    %c0_i32_2 = arith.constant 0 : i32
    return %c0_i32, %c0_i32_0, %c0_i32_1 : i32, i32, i32
  }
  func.func @transform_5(%arg0: i32) -> (i32, i32) {
    %c0_i32 = arith.constant 0 : i32
    %c0_i32_0 = arith.constant 0 : i32
    %c0_i32_1 = arith.constant 0 : i32
    return %c0_i32, %c0_i32_0 : i32, i32
  }
  func.func @transform_6(%arg0: i32) -> (i32, i32) {
    %c0_i32 = arith.constant 0 : i32
    %c0_i32_0 = arith.constant 0 : i32
    %c0_i32_1 = arith.constant 0 : i32
    return %c0_i32, %c0_i32_0 : i32, i32
  }
  func.func @transform_7(%arg0: i32) -> (i32, i32) {
    %c0_i32 = arith.constant 0 : i32
    %c0_i32_0 = arith.constant 0 : i32
    %c0_i32_1 = arith.constant 0 : i32
    return %c0_i32, %c0_i32_0 : i32, i32
  }
  func.func @transform_8(%arg0: i32) -> (i32, i32) {
    %c0_i32 = arith.constant 0 : i32
    %c0_i32_0 = arith.constant 0 : i32
    return %arg0, %c0_i32 : i32, i32
  }
}

</mosaic_0001>

<llo_original>
// kernel: angle_resnet_forward.1
$region0: #{angle_resnet_forward.1}
  #allocation0 [shape = 'u32[]', space=smem, size = 0x4, offset = 0x4, fixed_abs, tag = 'smem constant byte address 0x4 - core index']
  #allocation1 [shape = 'u32[144,128]{1,0:T(1,128)}', space=vmem, size = 0x12000, scoped, tag = 'internal scratch']
  %s0 = inlined_call_operand.vmem [shape: f32[16,160], index: 0, kind: input, shape index: {}]
  %s1 = inlined_call_operand.vmem [shape: bf16[160,128], index: 1, kind: input, shape index: {}]
  %s2 = inlined_call_operand.vmem [shape: f32[1,128], index: 2, kind: input, shape index: {}]
  %s3 = inlined_call_operand.vmem [shape: bf16[4,128,128], index: 3, kind: input, shape index: {}]
  %s4 = inlined_call_operand.vmem [shape: f32[4,1,128], index: 4, kind: input, shape index: {}]
  %s5 = inlined_call_operand.vmem [shape: bf16[128,8], index: 5, kind: input, shape index: {}]
  %s6 = inlined_call_operand.vmem [shape: f32[1,8], index: 6, kind: input, shape index: {}]
  %s7 = inlined_call_operand.vmem [shape: f32[8,8], index: 7, kind: input, shape index: {}]
  %s8 = inlined_call_operand.vmem [shape: f32[16,16], index: 8, kind: output, shape index: {}]
  %s9 = sld [smem:[#allocation0]]
  $region65: #{angle_resnet_forward.1} parent=0
    _
  %s11 = ssub.s32 1, %s9
  %s12 = scalar_select 0, %s11, %s9
  loop: start=0, step=1, limit=4
  $region2: #{angle_resnet_forward.1} parent=0 // loop_pre_header
    _
  $region3: #{angle_resnet_forward.1} parent=0 // loop_header
    %s14 = sphi 0, %s18
    %p15 = scmp.ge.s32.totalorder %s14, 4
    %s24 = sphi 0, %s26
    %s27 = sphi 0, %s24
    %s28 = sphi 0, %s27
    %s44 = sphi 0, %s28
    %s48 = sphi 0, %s48
    %s50 = sphi 0, %s48
    %s51 = sphi 0, %s50
    %s65 = sphi 0, %s51
    %s69 = sphi 0, %s69
    %s71 = sphi 0, %s69
    %s72 = sphi 0, %s71
    %s86 = sphi 0, %s72
    %s90 = sphi 0, %s90
    %s92 = sphi 0, %s90
    %s93 = sphi 0, %s92
    %s107 = sphi 0, %s93
    %s111 = sphi 0, %s111
    %s113 = sphi 0, %s111
    %s114 = sphi 0, %s113
    %s128 = sphi 0, %s114
    %s132 = sphi 0, %s132
    %s134 = sphi 0, %s132
    %s135 = sphi 0, %s134
    %s149 = sphi 0, %s135
    %s153 = sphi 0, %s153
    %s155 = sphi 0, %s153
    %s156 = sphi 0, %s155
    %s170 = sphi 0, %s156
    %s174 = sphi 0, %s174
    %s176 = sphi 0, %s174
    %s177 = sphi 0, %s176
    %s191 = sphi 0, %s177
    %s197 = sphi 0, %s199
    %s200 = sphi 0, %s197
    %s201 = sphi 0, %s200
    %s217 = sphi 0, %s201
  $region4: #{angle_resnet_forward.1} parent=0 // loop_header_branch
    %17 = sbr.rel (%p15) target = $region8
  $region5: #{angle_resnet_forward.1} parent=0 // loop_body
    %s19 = ssub.s32 %s14, 1
    %s20 = ssub.s32 %s14, 2
    %s21 = sadd.s32 %s14, 1
    %s22 = ssub.s32 %s14, %s21
    %p23 = scmp.eq.s32.totalorder %s22, 0
    %s25 = sadd.s32 %s24, 1
    %s26 = scalar_select %p23, %s24, %s25
    %p29 = pneg %p23
    %p30 = scmp.eq.s32.totalorder %s14, 1
    %p31 = por %p29, %p30
    %p32 = scmp.ne.s32.totalorder %s24, %s27
    %p33 = scmp.eq.s32.totalorder %s14, 0
    %p34 = por %p32, %p33
    %p35 = scmp.ne.s32.totalorder %s24, %s27
    %p36 = scmp.eq.s32.totalorder %s19, 1
    %p37 = por %p35, %p36
    %p38 = scmp.ne.s32.totalorder %s27, %s28
    %p39 = scmp.eq.s32.totalorder %s19, 0
    %p40 = por %p38, %p39
    %p41 = scmp.ne.s32.totalorder %s27, %s28
    %p42 = scmp.eq.s32.totalorder %s20, 1
    %p43 = por %p41, %p42
    %p45 = scmp.ne.s32.totalorder %s28, %s44
    %p46 = scmp.eq.s32.totalorder %s20, 0
    %p47 = por %p45, %p46
    %s49 = sadd.s32 %s48, 1
    %p52 = scmp.eq.s32.totalorder %s14, 1
    %p53 = scmp.ne.s32.totalorder %s48, %s50
    %p54 = scmp.eq.s32.totalorder %s14, 0
    %p55 = por %p53, %p54
    %p56 = scmp.ne.s32.totalorder %s48, %s50
    %p57 = scmp.eq.s32.totalorder %s19, 1
    %p58 = por %p56, %p57
    %p59 = scmp.ne.s32.totalorder %s50, %s51
    %p60 = scmp.eq.s32.totalorder %s19, 0
    %p61 = por %p59, %p60
    %p62 = scmp.ne.s32.totalorder %s50, %s51
    %p63 = scmp.eq.s32.totalorder %s20, 1
    %p64 = por %p62, %p63
    %p66 = scmp.ne.s32.totalorder %s51, %s65
    %p67 = scmp.eq.s32.totalorder %s20, 0
    %p68 = por %p66, %p67
    %s70 = sadd.s32 %s69, 1
    %p73 = scmp.eq.s32.totalorder %s14, 1
    %p74 = scmp.ne.s32.totalorder %s69, %s71
    %p75 = scmp.eq.s32.totalorder %s14, 0
    %p76 = por %p74, %p75
    %p77 = scmp.ne.s32.totalorder %s69, %s71
    %p78 = scmp.eq.s32.totalorder %s19, 1
    %p79 = por %p77, %p78
    %p80 = scmp.ne.s32.totalorder %s71, %s72
    %p81 = scmp.eq.s32.totalorder %s19, 0
    %p82 = por %p80, %p81
    %p83 = scmp.ne.s32.totalorder %s71, %s72
    %p84 = scmp.eq.s32.totalorder %s20, 1
    %p85 = por %p83, %p84
    %p87 = scmp.ne.s32.totalorder %s72, %s86
    %p88 = scmp.eq.s32.totalorder %s20, 0
    %p89 = por %p87, %p88
    %s91 = sadd.s32 %s90, 1
    %p94 = scmp.eq.s32.totalorder %s14, 1
    %p95 = scmp.ne.s32.totalorder %s90, %s92
    %p96 = scmp.eq.s32.totalorder %s14, 0
    %p97 = por %p95, %p96
    %p98 = scmp.ne.s32.totalorder %s90, %s92
    %p99 = scmp.eq.s32.totalorder %s19, 1
    %p100 = por %p98, %p99
    %p101 = scmp.ne.s32.totalorder %s92, %s93
    %p102 = scmp.eq.s32.totalorder %s19, 0
    %p103 = por %p101, %p102
    %p104 = scmp.ne.s32.totalorder %s92, %s93
    %p105 = scmp.eq.s32.totalorder %s20, 1
    %p106 = por %p104, %p105
    %p108 = scmp.ne.s32.totalorder %s93, %s107
    %p109 = scmp.eq.s32.totalorder %s20, 0
    %p110 = por %p108, %p109
    %s112 = sadd.s32 %s111, 1
    %p115 = scmp.eq.s32.totalorder %s14, 1
    %p116 = scmp.ne.s32.totalorder %s111, %s113
    %p117 = scmp.eq.s32.totalorder %s14, 0
    %p118 = por %p116, %p117
    %p119 = scmp.ne.s32.totalorder %s111, %s113
    %p120 = scmp.eq.s32.totalorder %s19, 1
    %p121 = por %p119, %p120
    %p122 = scmp.ne.s32.totalorder %s113, %s114
    %p123 = scmp.eq.s32.totalorder %s19, 0
    %p124 = por %p122, %p123
    %p125 = scmp.ne.s32.totalorder %s113, %s114
    %p126 = scmp.eq.s32.totalorder %s20, 1
    %p127 = por %p125, %p126
    %p129 = scmp.ne.s32.totalorder %s114, %s128
    %p130 = scmp.eq.s32.totalorder %s20, 0
    %p131 = por %p129, %p130
    %s133 = sadd.s32 %s132, 1
    %p136 = scmp.eq.s32.totalorder %s14, 1
    %p137 = scmp.ne.s32.totalorder %s132, %s134
    %p138 = scmp.eq.s32.totalorder %s14, 0
    %p139 = por %p137, %p138
    %p140 = scmp.ne.s32.totalorder %s132, %s134
    %p141 = scmp.eq.s32.totalorder %s19, 1
    %p142 = por %p140, %p141
    %p143 = scmp.ne.s32.totalorder %s134, %s135
    %p144 = scmp.eq.s32.totalorder %s19, 0
    %p145 = por %p143, %p144
    %p146 = scmp.ne.s32.totalorder %s134, %s135
    %p147 = scmp.eq.s32.totalorder %s20, 1
    %p148 = por %p146, %p147
    %p150 = scmp.ne.s32.totalorder %s135, %s149
    %p151 = scmp.eq.s32.totalorder %s20, 0
    %p152 = por %p150, %p151
    %s154 = sadd.s32 %s153, 1
    %p157 = scmp.eq.s32.totalorder %s14, 1
    %p158 = scmp.ne.s32.totalorder %s153, %s155
    %p159 = scmp.eq.s32.totalorder %s14, 0
    %p160 = por %p158, %p159
    %p161 = scmp.ne.s32.totalorder %s153, %s155
    %p162 = scmp.eq.s32.totalorder %s19, 1
    %p163 = por %p161, %p162
    %p164 = scmp.ne.s32.totalorder %s155, %s156
    %p165 = scmp.eq.s32.totalorder %s19, 0
    %p166 = por %p164, %p165
    %p167 = scmp.ne.s32.totalorder %s155, %s156
    %p168 = scmp.eq.s32.totalorder %s20, 1
    %p169 = por %p167, %p168
    %p171 = scmp.ne.s32.totalorder %s156, %s170
    %p172 = scmp.eq.s32.totalorder %s20, 0
    %p173 = por %p171, %p172
    %s175 = sadd.s32 %s174, 1
    %p178 = scmp.eq.s32.totalorder %s14, 1
    %p179 = scmp.ne.s32.totalorder %s174, %s176
    %p180 = scmp.eq.s32.totalorder %s14, 0
    %p181 = por %p179, %p180
    %p182 = scmp.ne.s32.totalorder %s174, %s176
    %p183 = scmp.eq.s32.totalorder %s19, 1
    %p184 = por %p182, %p183
    %p185 = scmp.ne.s32.totalorder %s176, %s177
    %p186 = scmp.eq.s32.totalorder %s19, 0
    %p187 = por %p185, %p186
    %p188 = scmp.ne.s32.totalorder %s176, %s177
    %p189 = scmp.eq.s32.totalorder %s20, 1
    %p190 = por %p188, %p189
    %p192 = scmp.ne.s32.totalorder %s177, %s191
    %p193 = scmp.eq.s32.totalorder %s20, 0
    %p194 = por %p192, %p193
    %s195 = ssub.s32 %s14, %s21
    %p196 = scmp.eq.s32.totalorder %s195, 0
    %s198 = sadd.s32 %s197, 1
    %s199 = scalar_select %p196, %s197, %s198
    %p202 = pneg %p196
    %p203 = scmp.eq.s32.totalorder %s14, 1
    %p204 = por %p202, %p203
    %p205 = scmp.ne.s32.totalorder %s197, %s200
    %p206 = scmp.eq.s32.totalorder %s14, 0
    %p207 = por %p205, %p206
    %p208 = scmp.ne.s32.totalorder %s197, %s200
    %p209 = scmp.eq.s32.totalorder %s19, 1
    %p210 = por %p208, %p209
    %p211 = scmp.ne.s32.totalorder %s200, %s201
    %p212 = scmp.eq.s32.totalorder %s19, 0
    %p213 = por %p211, %p212
    %p214 = scmp.ne.s32.totalorder %s200, %s201
    %p215 = scmp.eq.s32.totalorder %s20, 1
    %p216 = por %p214, %p215
    %p218 = scmp.ne.s32.totalorder %s201, %s217
    %p219 = scmp.eq.s32.totalorder %s20, 0
    %p220 = por %p218, %p219
    %p221 = scmp.le.s32.totalorder 1, %s14
    %p222 = scmp.lt.s32.totalorder %s14, 3
    %p223 = pnand %p221, %p222
    %p224 = pneg %p223
    // Predicated region
    $region9: #{angle_resnet_forward.1} parent=5 // pred_check
      _
    $region10: #{angle_resnet_forward.1} parent=5 // pred_check_branch
      %226 = sbr.rel (%p223) target = $region12
    $region11: #{angle_resnet_forward.1} parent=5 // pred_region
      %s227 = ssub.s32 %s14, 1
      // Predicated region
      $region13: #{angle_resnet_forward.1} parent=11 // pred_check
        %p228 = pneg %p61
      $region14: #{angle_resnet_forward.1} parent=11 // pred_check_branch
        %230 = sbr.rel (%p228) target = $region16
      $region15: #{angle_resnet_forward.1} parent=11 // pred_region
        _
      $region16: #{angle_resnet_forward.1} parent=11 // pred_fallthru
        _
      // Predicated region
      $region17: #{angle_resnet_forward.1} parent=11 // pred_check
        %p231 = pneg %p82
      $region18: #{angle_resnet_forward.1} parent=11 // pred_check_branch
        %233 = sbr.rel (%p231) target = $region20
      $region19: #{angle_resnet_forward.1} parent=11 // pred_region
        _
      $region20: #{angle_resnet_forward.1} parent=11 // pred_fallthru
        _
      // Predicated region
      $region21: #{angle_resnet_forward.1} parent=11 // pred_check
        %p234 = pneg %p103
      $region22: #{angle_resnet_forward.1} parent=11 // pred_check_branch
        %236 = sbr.rel (%p234) target = $region24
      $region23: #{angle_resnet_forward.1} parent=11 // pred_region
        _
      $region24: #{angle_resnet_forward.1} parent=11 // pred_fallthru
        _
      // Predicated region
      $region25: #{angle_resnet_forward.1} parent=11 // pred_check
        %p237 = pneg %p124
      $region26: #{angle_resnet_forward.1} parent=11 // pred_check_branch
        %239 = sbr.rel (%p237) target = $region28
      $region27: #{angle_resnet_forward.1} parent=11 // pred_region
        _
      $region28: #{angle_resnet_forward.1} parent=11 // pred_fallthru
        _
      // Predicated region
      $region29: #{angle_resnet_forward.1} parent=11 // pred_check
        %p240 = pneg %p145
      $region30: #{angle_resnet_forward.1} parent=11 // pred_check_branch
        %242 = sbr.rel (%p240) target = $region32
      $region31: #{angle_resnet_forward.1} parent=11 // pred_region
        _
      $region32: #{angle_resnet_forward.1} parent=11 // pred_fallthru
        _
      // Predicated region
      $region33: #{angle_resnet_forward.1} parent=11 // pred_check
        %p243 = pneg %p166
      $region34: #{angle_resnet_forward.1} parent=11 // pred_check_branch
        %245 = sbr.rel (%p243) target = $region36
      $region35: #{angle_resnet_forward.1} parent=11 // pred_region
        _
      $region36: #{angle_resnet_forward.1} parent=11 // pred_fallthru
        _
      // Predicated region
      $region37: #{angle_resnet_forward.1} parent=11 // pred_check
        %p246 = pneg %p187
      $region38: #{angle_resnet_forward.1} parent=11 // pred_check_branch
        %248 = sbr.rel (%p246) target = $region40
      $region39: #{angle_resnet_forward.1} parent=11 // pred_region
        _
      $region40: #{angle_resnet_forward.1} parent=11 // pred_fallthru
        _
    $region12: #{angle_resnet_forward.1} parent=5 // pred_fallthru
      _
    %p249 = scmp.lt.s32.totalorder %s14, 2
    // Predicated region
    $region41: #{angle_resnet_forward.1} parent=5 // pred_check
      %p250 = pneg %p249
    $region42: #{angle_resnet_forward.1} parent=5 // pred_check_branch
      %252 = sbr.rel (%p250) target = $region44
    $region43: #{angle_resnet_forward.1} parent=5 // pred_region
      // Predicated region
      $region45: #{angle_resnet_forward.1} parent=43 // pred_check
        %p253 = pneg %p34
      $region46: #{angle_resnet_forward.1} parent=43 // pred_check_branch
        %255 = sbr.rel (%p253) target = $region48
      $region47: #{angle_resnet_forward.1} parent=43 // pred_region
        %p256 = scmp.lt.s32.totalorder %s14, 1
        %s257 = scalar_select %p256, %s14, 1
        %s258 = smul.addr %s257, 2
        %s259 = smul.addr %s258, 8
        %s260 = scalar_lea.vmem %s0, %s259
      $region48: #{angle_resnet_forward.1} parent=43 // pred_fallthru
        _
    $region44: #{angle_resnet_forward.1} parent=5 // pred_fallthru
      _
    %p261 = scmp.le.s32.totalorder 1, %s14
    %p262 = scmp.lt.s32.totalorder %s14, 3
    %p263 = pnand %p261, %p262
    %p264 = pneg %p263
    // Predicated region
    $region49: #{angle_resnet_forward.1} parent=5 // pred_check
      _
    $region50: #{angle_resnet_forward.1} parent=5 // pred_check_branch
      %266 = sbr.rel (%p263) target = $region52
    $region51: #{angle_resnet_forward.1} parent=5 // pred_region
      %s267 = ssub.s32 %s14, 1
      %p268 = scmp.lt.s32.totalorder %s19, 1
      %s269 = scalar_select %p268, %s19, 1
      %s270 = smul.addr %s269, 2
      %s271 = smul.addr %s270, 8
      %s272 = scalar_lea.vmem %s0, %s271
      %p273 = pneg %p40
      %p274 = pneg %p37
      %p275 = pneg %p61
      %p276 = pneg %p58
      %p277 = pneg %p82
      %p278 = pneg %p79
      %p279 = pneg %p103
      %p280 = pneg %p100
      %p281 = pneg %p124
      %p282 = pneg %p121
      %p283 = pneg %p145
      %p284 = pneg %p142
      %p285 = pneg %p166
      %p286 = pneg %p163
      %p287 = pneg %p187
      %p288 = pneg %p184
      %p289 = pneg %p213
      %p290 = pneg %p210
      %p291 = scmp.lt.s32.totalorder %s19, 1
      %s292 = scalar_select %p291, %s19, 1
      %s293 = smul.addr %s292, 8
      %s294 = scalar_lea.vmem %s8, %s293
      %p295 = scmp.lt.s32.totalorder %s19, 1
      %s296 = scalar_select %p295, %s19, 1
      %s297 = smul.addr %s296, 2
      %s298 = smul.addr %s297, 8
      %s299 = scalar_lea.vmem %s0, %s298
      %p300 = scmp.lt.s32.totalorder %s19, 1
      %s301 = scalar_select %p300, %s19, 1
      %s302 = smul.addr %s301, 8
      %s303 = scalar_lea.vmem %s8, %s302
      %v305 = vld [vmem:[%s299] sm:$0xff]
      %v306 = vld [vmem:[%s299 + $0x8] sm:$0xff]
      %v307 = vmax.f32 %v305, 0.0
      %v308 = vmax.f32 %v306, 0.0
      %v309 = vld [vmem:[%s1] sm:$0xf]
      %v310 = vld [vmem:[%s1 + $0x4] sm:$0xf]
      %v311 = vld [vmem:[%s1 + $0x8] sm:$0xf]
      %v312 = vld [vmem:[%s1 + $0xc] sm:$0xf]
      %v313 = vld [vmem:[%s1 + $0x10] sm:$0xf]
      %v314 = vld [vmem:[%s1 + $0x14] sm:$0xf]
      %v315 = vld [vmem:[%s1 + $0x18] sm:$0xf]
      %v316 = vld [vmem:[%s1 + $0x1c] sm:$0xf]
      %v317 = vld [vmem:[%s1 + $0x20] sm:$0xf]
      %v318 = vld [vmem:[%s1 + $0x24] sm:$0xf]
      %v319 = vld [vmem:[%s1 + $0x28] sm:$0xf]
      %v320 = vld [vmem:[%s1 + $0x2c] sm:$0xf]
      %v321 = vld [vmem:[%s1 + $0x30] sm:$0xf]
      %v322 = vld [vmem:[%s1 + $0x34] sm:$0xf]
      %v323 = vld [vmem:[%s1 + $0x38] sm:$0xf]
      %v324 = vld [vmem:[%s1 + $0x3c] sm:$0xf]
      %v325 = vld [vmem:[%s1 + $0x40] sm:$0xf]
      %v326 = vld [vmem:[%s1 + $0x44] sm:$0xf]
      %v327 = vld [vmem:[%s1 + $0x48] sm:$0xf]
      %v328 = vld [vmem:[%s1 + $0x4c] sm:$0xf]
      %v329 = vpack.c.bf16 %v307, %v307
      %v330 = vpack.c.bf16 %v308, %v308
      %v331 = vld [vmem:[%s2] sm:$0x1]
      %v333 = vlaneseq
      %v334 = vshrl.u32 %v333, 7
      %v335 = vsub.s32 0, %v334
      %v336 = vrot.slane %v331, %v335
      %v358 = vunpack.c.l.b16 %v309
      %v359 = vunpack.c.l.b16 %v310
      %v360 = vunpack.c.l.b16 %v311
      %v361 = vunpack.c.l.b16 %v312
      %v362 = vunpack.c.l.b16 %v313
      %v363 = vunpack.c.l.b16 %v314
      %v364 = vunpack.c.l.b16 %v315
      %v365 = vunpack.c.l.b16 %v316
      %v366 = vunpack.c.l.b16 %v317
      %v367 = vunpack.c.l.b16 %v318
      %v368 = vunpack.c.l.b16 %v319
      %v369 = vunpack.c.l.b16 %v320
      %v370 = vunpack.c.l.b16 %v321
      %v371 = vunpack.c.l.b16 %v322
      %v372 = vunpack.c.l.b16 %v323
      %v373 = vunpack.c.l.b16 %v324
      %v374 = vunpack.c.l.b16 %v325
      %v375 = vunpack.c.l.b16 %v326
      %v376 = vunpack.c.l.b16 %v327
      %v377 = vunpack.c.l.b16 %v328
      %v378 = vpack.c.b16 %v359, %v358
      %v379 = vpack.c.b16 %v361, %v360
      %v380 = vpack.c.b16 %v363, %v362
      %v381 = vpack.c.b16 %v365, %v364
      %v382 = vpack.c.b16 %v367, %v366
      %v383 = vpack.c.b16 %v369, %v368
      %v384 = vpack.c.b16 %v371, %v370
      %v385 = vpack.c.b16 %v373, %v372
      %v386 = vpack.c.b16 %v375, %v374
      %v387 = vpack.c.b16 %v377, %v376
      %vm398 = vcmask 261120
      %v400 = vsel %vm398, %v330, 0
      %402 = vmatprep.subr.bf16.mxu0 0
      %403 = vmatpush1.bf16.msra.mxu0 %v378
      %404 = vmatprep.subr.bf16.mxu0 0
      %405 = vmatpush1.bf16.msra.mxu0 %v379
      %406 = vmatprep.subr.bf16.mxu0 0
      %407 = vmatpush1.bf16.msra.mxu0 %v380
      %408 = vmatprep.subr.bf16.mxu0 0
      %409 = vmatpush1.bf16.msra.mxu0 %v381
      %410 = vmatprep.subr.bf16.mxu0 0
      %411 = vmatpush1.bf16.msra.mxu0 %v382
      %412 = vmatprep.subr.bf16.mxu0 0
      %413 = vmatpush1.bf16.msra.mxu0 %v383
      %414 = vmatprep.subr.bf16.mxu0 0
      %415 = vmatpush1.bf16.msra.mxu0 %v384
      %416 = vmatprep.subr.bf16.mxu0 0
      %417 = vmatpush1.bf16.msra.mxu0 %v385
      %418 = vmatprep.subr.bf16.mxu0 0
      %419 = vmatpush1.bf16.msra.mxu0 %v386
      %420 = vmatprep.subr.bf16.mxu0 0
      %421 = vmatpush1.bf16.msra.mxu0 %v387
      %422 = vmatprep.subr.bf16.mxu0 0
      %423 = vmatpush1.bf16.msra.mxu0 0
      %424 = vmatprep.subr.bf16.mxu0 0
      %425 = vmatpush1.bf16.msra.mxu0 0
      %426 = vmatprep.subr.bf16.mxu0 0
      %427 = vmatpush1.bf16.msra.mxu0 0
      %428 = vmatprep.subr.bf16.mxu0 0
      %429 = vmatpush1.bf16.msra.mxu0 0
      %430 = vmatprep.subr.bf16.mxu0 0
      %431 = vmatpush1.bf16.msra.mxu0 0
      %432 = vmatprep.subr.bf16.mxu0 0
      %433 = vmatpush1.bf16.msra.mxu0 0
      %434 = vmatprep.mubr.bf16.mxu0 %v400
      %435 = vmatmul.mubr.bf16.gmra.mrb[0].mxu0 %v329
      %v436 = vpop.f32.mrb[0].mxu0
      %v437 = vadd.f32 %v336, %v436
      %v438 = vpop.f32.mrb[0].mxu0
      %v439 = vpop.f32.mrb[0].mxu0
      %v440 = vpop.f32.mrb[0].mxu0
      %441 = vdwg.mxu0
      %v442 = vmax.f32 %v437, 0.0
      %v443 = vld [vmem:[%s3] sm:$0xf]
      %v444 = vld [vmem:[%s3 + $0x4] sm:$0xf]
      %v445 = vld [vmem:[%s3 + $0x8] sm:$0xf]
      %v446 = vld [vmem:[%s3 + $0xc] sm:$0xf]
      %v447 = vld [vmem:[%s3 + $0x10] sm:$0xf]
      %v448 = vld [vmem:[%s3 + $0x14] sm:$0xf]
      %v449 = vld [vmem:[%s3 + $0x18] sm:$0xf]
      %v450 = vld [vmem:[%s3 + $0x1c] sm:$0xf]
      %v451 = vld [vmem:[%s3 + $0x20] sm:$0xf]
      %v452 = vld [vmem:[%s3 + $0x24] sm:$0xf]
      %v453 = vld [vmem:[%s3 + $0x28] sm:$0xf]
      %v454 = vld [vmem:[%s3 + $0x2c] sm:$0xf]
      %v455 = vld [vmem:[%s3 + $0x30] sm:$0xf]
      %v456 = vld [vmem:[%s3 + $0x34] sm:$0xf]
      %v457 = vld [vmem:[%s3 + $0x38] sm:$0xf]
      %v458 = vld [vmem:[%s3 + $0x3c] sm:$0xf]
      %v459 = vpack.c.bf16 %v442, %v442
      %v460 = vld [vmem:[%s4] sm:$0x1]
      %v462 = vlaneseq
      %v463 = vshrl.u32 %v462, 7
      %v464 = vsub.s32 0, %v463
      %v465 = vrot.slane %v460, %v464
      %v483 = vunpack.c.l.b16 %v443
      %v484 = vunpack.c.l.b16 %v444
      %v485 = vunpack.c.l.b16 %v445
      %v486 = vunpack.c.l.b16 %v446
      %v487 = vunpack.c.l.b16 %v447
      %v488 = vunpack.c.l.b16 %v448
      %v489 = vunpack.c.l.b16 %v449
      %v490 = vunpack.c.l.b16 %v450
      %v491 = vunpack.c.l.b16 %v451
      %v492 = vunpack.c.l.b16 %v452
      %v493 = vunpack.c.l.b16 %v453
      %v494 = vunpack.c.l.b16 %v454
      %v495 = vunpack.c.l.b16 %v455
      %v496 = vunpack.c.l.b16 %v456
      %v497 = vunpack.c.l.b16 %v457
      %v498 = vunpack.c.l.b16 %v458
      %v499 = vpack.c.b16 %v484, %v483
      %v500 = vpack.c.b16 %v486, %v485
      %v501 = vpack.c.b16 %v488, %v487
      %v502 = vpack.c.b16 %v490, %v489
      %v503 = vpack.c.b16 %v492, %v491
      %v504 = vpack.c.b16 %v494, %v493
      %v505 = vpack.c.b16 %v496, %v495
      %v506 = vpack.c.b16 %v498, %v497
      %515 = vmatprep.subr.bf16.mxu0 0
      %516 = vmatpush1.bf16.msra.mxu0 %v499
      %517 = vmatprep.subr.bf16.mxu0 0
      %518 = vmatpush1.bf16.msra.mxu0 %v500
      %519 = vmatprep.subr.bf16.mxu0 0
      %520 = vmatpush1.bf16.msra.mxu0 %v501
      %521 = vmatprep.subr.bf16.mxu0 0
      %522 = vmatpush1.bf16.msra.mxu0 %v502
      %523 = vmatprep.subr.bf16.mxu0 0
      %524 = vmatpush1.bf16.msra.mxu0 %v503
      %525 = vmatprep.subr.bf16.mxu0 0
      %526 = vmatpush1.bf16.msra.mxu0 %v504
      %527 = vmatprep.subr.bf16.mxu0 0
      %528 = vmatpush1.bf16.msra.mxu0 %v505
      %529 = vmatprep.subr.bf16.mxu0 0
      %530 = vmatpush1.bf16.msra.mxu0 %v506
      %531 = vmatprep.subr.bf16.mxu0 0
      %532 = vmatpush1.bf16.msra.mxu0 0
      %533 = vmatprep.subr.bf16.mxu0 0
      %534 = vmatpush1.bf16.msra.mxu0 0
      %535 = vmatprep.subr.bf16.mxu0 0
      %536 = vmatpush1.bf16.msra.mxu0 0
      %537 = vmatprep.subr.bf16.mxu0 0
      %538 = vmatpush1.bf16.msra.mxu0 0
      %539 = vmatprep.subr.bf16.mxu0 0
      %540 = vmatpush1.bf16.msra.mxu0 0
      %541 = vmatprep.subr.bf16.mxu0 0
      %542 = vmatpush1.bf16.msra.mxu0 0
      %543 = vmatprep.subr.bf16.mxu0 0
      %544 = vmatpush1.bf16.msra.mxu0 0
      %545 = vmatprep.subr.bf16.mxu0 0
      %546 = vmatpush1.bf16.msra.mxu0 0
      %547 = vmatprep.mubr.bf16.mxu0 0
      %548 = vmatmul.mubr.bf16.gmra.mrb[0].mxu0 %v459
      %v549 = vpop.f32.mrb[0].mxu0
      %v550 = vadd.f32 %v465, %v549
      %v551 = vpop.f32.mrb[0].mxu0
      %v552 = vpop.f32.mrb[0].mxu0
      %v553 = vpop.f32.mrb[0].mxu0
      %554 = vdwg.mxu0
      %v555 = vmax.f32 %v550, 0.0
      %s556 = scalar_lea.vmem %s3, 64
      %v557 = vld [vmem:[%s556] sm:$0xf]
      %v558 = vld [vmem:[%s556 + $0x4] sm:$0xf]
      %v559 = vld [vmem:[%s556 + $0x8] sm:$0xf]
      %v560 = vld [vmem:[%s556 + $0xc] sm:$0xf]
      %v561 = vld [vmem:[%s556 + $0x10] sm:$0xf]
      %v562 = vld [vmem:[%s556 + $0x14] sm:$0xf]
      %v563 = vld [vmem:[%s556 + $0x18] sm:$0xf]
      %v564 = vld [vmem:[%s556 + $0x1c] sm:$0xf]
      %v565 = vld [vmem:[%s556 + $0x20] sm:$0xf]
      %v566 = vld [vmem:[%s556 + $0x24] sm:$0xf]
      %v567 = vld [vmem:[%s556 + $0x28] sm:$0xf]
      %v568 = vld [vmem:[%s556 + $0x2c] sm:$0xf]
      %v569 = vld [vmem:[%s556 + $0x30] sm:$0xf]
      %v570 = vld [vmem:[%s556 + $0x34] sm:$0xf]
      %v571 = vld [vmem:[%s556 + $0x38] sm:$0xf]
      %v572 = vld [vmem:[%s556 + $0x3c] sm:$0xf]
      %v573 = vpack.c.bf16 %v555, %v555
      %s574 = scalar_lea.vmem %s4, 1
      %v575 = vld [vmem:[%s574] sm:$0x1]
      %v577 = vlaneseq
      %v578 = vshrl.u32 %v577, 7
      %v579 = vsub.s32 0, %v578
      %v580 = vrot.slane %v575, %v579
      %v598 = vunpack.c.l.b16 %v557
      %v599 = vunpack.c.l.b16 %v558
      %v600 = vunpack.c.l.b16 %v559
      %v601 = vunpack.c.l.b16 %v560
      %v602 = vunpack.c.l.b16 %v561
      %v603 = vunpack.c.l.b16 %v562
      %v604 = vunpack.c.l.b16 %v563
      %v605 = vunpack.c.l.b16 %v564
      %v606 = vunpack.c.l.b16 %v565
      %v607 = vunpack.c.l.b16 %v566
      %v608 = vunpack.c.l.b16 %v567
      %v609 = vunpack.c.l.b16 %v568
      %v610 = vunpack.c.l.b16 %v569
      %v611 = vunpack.c.l.b16 %v570
      %v612 = vunpack.c.l.b16 %v571
      %v613 = vunpack.c.l.b16 %v572
      %v614 = vpack.c.b16 %v599, %v598
      %v615 = vpack.c.b16 %v601, %v600
      %v616 = vpack.c.b16 %v603, %v602
      %v617 = vpack.c.b16 %v605, %v604
      %v618 = vpack.c.b16 %v607, %v606
      %v619 = vpack.c.b16 %v609, %v608
      %v620 = vpack.c.b16 %v611, %v610
      %v621 = vpack.c.b16 %v613, %v612
      %630 = vmatprep.subr.bf16.mxu0 0
      %631 = vmatpush1.bf16.msra.mxu0 %v614
      %632 = vmatprep.subr.bf16.mxu0 0
      %633 = vmatpush1.bf16.msra.mxu0 %v615
      %634 = vmatprep.subr.bf16.mxu0 0
      %635 = vmatpush1.bf16.msra.mxu0 %v616
      %636 = vmatprep.subr.bf16.mxu0 0
      %637 = vmatpush1.bf16.msra.mxu0 %v617
      %638 = vmatprep.subr.bf16.mxu0 0
      %639 = vmatpush1.bf16.msra.mxu0 %v618
      %640 = vmatprep.subr.bf16.mxu0 0
      %641 = vmatpush1.bf16.msra.mxu0 %v619
      %642 = vmatprep.subr.bf16.mxu0 0
      %643 = vmatpush1.bf16.msra.mxu0 %v620
      %644 = vmatprep.subr.bf16.mxu0 0
      %645 = vmatpush1.bf16.msra.mxu0 %v621
      %646 = vmatprep.subr.bf16.mxu0 0
      %647 = vmatpush1.bf16.msra.mxu0 0
      %648 = vmatprep.subr.bf16.mxu0 0
      %649 = vmatpush1.bf16.msra.mxu0 0
      %650 = vmatprep.subr.bf16.mxu0 0
      %651 = vmatpush1.bf16.msra.mxu0 0
      %652 = vmatprep.subr.bf16.mxu0 0
      %653 = vmatpush1.bf16.msra.mxu0 0
      %654 = vmatprep.subr.bf16.mxu0 0
      %655 = vmatpush1.bf16.msra.mxu0 0
      %656 = vmatprep.subr.bf16.mxu0 0
      %657 = vmatpush1.bf16.msra.mxu0 0
      %658 = vmatprep.subr.bf16.mxu0 0
      %659 = vmatpush1.bf16.msra.mxu0 0
      %660 = vmatprep.subr.bf16.mxu0 0
      %661 = vmatpush1.bf16.msra.mxu0 0
      %662 = vmatprep.mubr.bf16.mxu0 0
      %663 = vmatmul.mubr.bf16.gmra.mrb[0].mxu0 %v573
      %v664 = vpop.f32.mrb[0].mxu0
      %v665 = vadd.f32 %v580, %v664
      %v666 = vpop.f32.mrb[0].mxu0
      %v667 = vpop.f32.mrb[0].mxu0
      %v668 = vpop.f32.mrb[0].mxu0
      %669 = vdwg.mxu0
      %v670 = vadd.f32 %v437, %v665
      %v671 = vmax.f32 %v670, 0.0
      %s672 = scalar_lea.vmem %s3, 128
      %v673 = vld [vmem:[%s672] sm:$0xf]
      %v674 = vld [vmem:[%s672 + $0x4] sm:$0xf]
      %v675 = vld [vmem:[%s672 + $0x8] sm:$0xf]
      %v676 = vld [vmem:[%s672 + $0xc] sm:$0xf]
      %v677 = vld [vmem:[%s672 + $0x10] sm:$0xf]
      %v678 = vld [vmem:[%s672 + $0x14] sm:$0xf]
      %v679 = vld [vmem:[%s672 + $0x18] sm:$0xf]
      %v680 = vld [vmem:[%s672 + $0x1c] sm:$0xf]
      %v681 = vld [vmem:[%s672 + $0x20] sm:$0xf]
      %v682 = vld [vmem:[%s672 + $0x24] sm:$0xf]
      %v683 = vld [vmem:[%s672 + $0x28] sm:$0xf]
      %v684 = vld [vmem:[%s672 + $0x2c] sm:$0xf]
      %v685 = vld [vmem:[%s672 + $0x30] sm:$0xf]
      %v686 = vld [vmem:[%s672 + $0x34] sm:$0xf]
      %v687 = vld [vmem:[%s672 + $0x38] sm:$0xf]
      %v688 = vld [vmem:[%s672 + $0x3c] sm:$0xf]
      %v689 = vpack.c.bf16 %v671, %v671
      %s690 = scalar_lea.vmem %s4, 2
      %v691 = vld [vmem:[%s690] sm:$0x1]
      %v693 = vlaneseq
      %v694 = vshrl.u32 %v693, 7
      %v695 = vsub.s32 0, %v694
      %v696 = vrot.slane %v691, %v695
      %v714 = vunpack.c.l.b16 %v673
      %v715 = vunpack.c.l.b16 %v674
      %v716 = vunpack.c.l.b16 %v675
      %v717 = vunpack.c.l.b16 %v676
      %v718 = vunpack.c.l.b16 %v677
      %v719 = vunpack.c.l.b16 %v678
      %v720 = vunpack.c.l.b16 %v679
      %v721 = vunpack.c.l.b16 %v680
      %v722 = vunpack.c.l.b16 %v681
      %v723 = vunpack.c.l.b16 %v682
      %v724 = vunpack.c.l.b16 %v683
      %v725 = vunpack.c.l.b16 %v684
      %v726 = vunpack.c.l.b16 %v685
      %v727 = vunpack.c.l.b16 %v686
      %v728 = vunpack.c.l.b16 %v687
      %v729 = vunpack.c.l.b16 %v688
      %v730 = vpack.c.b16 %v715, %v714
      %v731 = vpack.c.b16 %v717, %v716
      %v732 = vpack.c.b16 %v719, %v718
      %v733 = vpack.c.b16 %v721, %v720
      %v734 = vpack.c.b16 %v723, %v722
      %v735 = vpack.c.b16 %v725, %v724
      %v736 = vpack.c.b16 %v727, %v726
      %v737 = vpack.c.b16 %v729, %v728
      %746 = vmatprep.subr.bf16.mxu0 0
      %747 = vmatpush1.bf16.msra.mxu0 %v730
      %748 = vmatprep.subr.bf16.mxu0 0
      %749 = vmatpush1.bf16.msra.mxu0 %v731
      %750 = vmatprep.subr.bf16.mxu0 0
      %751 = vmatpush1.bf16.msra.mxu0 %v732
      %752 = vmatprep.subr.bf16.mxu0 0
      %753 = vmatpush1.bf16.msra.mxu0 %v733
      %754 = vmatprep.subr.bf16.mxu0 0
      %755 = vmatpush1.bf16.msra.mxu0 %v734
      %756 = vmatprep.subr.bf16.mxu0 0
      %757 = vmatpush1.bf16.msra.mxu0 %v735
      %758 = vmatprep.subr.bf16.mxu0 0
      %759 = vmatpush1.bf16.msra.mxu0 %v736
      %760 = vmatprep.subr.bf16.mxu0 0
      %761 = vmatpush1.bf16.msra.mxu0 %v737
      %762 = vmatprep.subr.bf16.mxu0 0
      %763 = vmatpush1.bf16.msra.mxu0 0
      %764 = vmatprep.subr.bf16.mxu0 0
      %765 = vmatpush1.bf16.msra.mxu0 0
      %766 = vmatprep.subr.bf16.mxu0 0
      %767 = vmatpush1.bf16.msra.mxu0 0
      %768 = vmatprep.subr.bf16.mxu0 0
      %769 = vmatpush1.bf16.msra.mxu0 0
      %770 = vmatprep.subr.bf16.mxu0 0
      %771 = vmatpush1.bf16.msra.mxu0 0
      %772 = vmatprep.subr.bf16.mxu0 0
      %773 = vmatpush1.bf16.msra.mxu0 0
      %774 = vmatprep.subr.bf16.mxu0 0
      %775 = vmatpush1.bf16.msra.mxu0 0
      %776 = vmatprep.subr.bf16.mxu0 0
      %777 = vmatpush1.bf16.msra.mxu0 0
      %778 = vmatprep.mubr.bf16.mxu0 0
      %779 = vmatmul.mubr.bf16.gmra.mrb[0].mxu0 %v689
      %v780 = vpop.f32.mrb[0].mxu0
      %v781 = vadd.f32 %v696, %v780
      %v782 = vpop.f32.mrb[0].mxu0
      %v783 = vpop.f32.mrb[0].mxu0
      %v784 = vpop.f32.mrb[0].mxu0
      %785 = vdwg.mxu0
      %v786 = vmax.f32 %v781, 0.0
      %s787 = scalar_lea.vmem %s3, 192
      %v788 = vld [vmem:[%s787] sm:$0xf]
      %v789 = vld [vmem:[%s787 + $0x4] sm:$0xf]
      %v790 = vld [vmem:[%s787 + $0x8] sm:$0xf]
      %v791 = vld [vmem:[%s787 + $0xc] sm:$0xf]
      %v792 = vld [vmem:[%s787 + $0x10] sm:$0xf]
      %v793 = vld [vmem:[%s787 + $0x14] sm:$0xf]
      %v794 = vld [vmem:[%s787 + $0x18] sm:$0xf]
      %v795 = vld [vmem:[%s787 + $0x1c] sm:$0xf]
      %v796 = vld [vmem:[%s787 + $0x20] sm:$0xf]
      %v797 = vld [vmem:[%s787 + $0x24] sm:$0xf]
      %v798 = vld [vmem:[%s787 + $0x28] sm:$0xf]
      %v799 = vld [vmem:[%s787 + $0x2c] sm:$0xf]
      %v800 = vld [vmem:[%s787 + $0x30] sm:$0xf]
      %v801 = vld [vmem:[%s787 + $0x34] sm:$0xf]
      %v802 = vld [vmem:[%s787 + $0x38] sm:$0xf]
      %v803 = vld [vmem:[%s787 + $0x3c] sm:$0xf]
      %v804 = vpack.c.bf16 %v786, %v786
      %s805 = scalar_lea.vmem %s4, 3
      %v806 = vld [vmem:[%s805] sm:$0x1]
      %v808 = vlaneseq
      %v809 = vshrl.u32 %v808, 7
      %v810 = vsub.s32 0, %v809
      %v811 = vrot.slane %v806, %v810
      %v829 = vunpack.c.l.b16 %v788
      %v830 = vunpack.c.l.b16 %v789
      %v831 = vunpack.c.l.b16 %v790
      %v832 = vunpack.c.l.b16 %v791
      %v833 = vunpack.c.l.b16 %v792
      %v834 = vunpack.c.l.b16 %v793
      %v835 = vunpack.c.l.b16 %v794
      %v836 = vunpack.c.l.b16 %v795
      %v837 = vunpack.c.l.b16 %v796
      %v838 = vunpack.c.l.b16 %v797
      %v839 = vunpack.c.l.b16 %v798
      %v840 = vunpack.c.l.b16 %v799
      %v841 = vunpack.c.l.b16 %v800
      %v842 = vunpack.c.l.b16 %v801
      %v843 = vunpack.c.l.b16 %v802
      %v844 = vunpack.c.l.b16 %v803
      %v845 = vpack.c.b16 %v830, %v829
      %v846 = vpack.c.b16 %v832, %v831
      %v847 = vpack.c.b16 %v834, %v833
      %v848 = vpack.c.b16 %v836, %v835
      %v849 = vpack.c.b16 %v838, %v837
      %v850 = vpack.c.b16 %v840, %v839
      %v851 = vpack.c.b16 %v842, %v841
      %v852 = vpack.c.b16 %v844, %v843
      %861 = vmatprep.subr.bf16.mxu0 0
      %862 = vmatpush1.bf16.msra.mxu0 %v845
      %863 = vmatprep.subr.bf16.mxu0 0
      %864 = vmatpush1.bf16.msra.mxu0 %v846
      %865 = vmatprep.subr.bf16.mxu0 0
      %866 = vmatpush1.bf16.msra.mxu0 %v847
      %867 = vmatprep.subr.bf16.mxu0 0
      %868 = vmatpush1.bf16.msra.mxu0 %v848
      %869 = vmatprep.subr.bf16.mxu0 0
      %870 = vmatpush1.bf16.msra.mxu0 %v849
      %871 = vmatprep.subr.bf16.mxu0 0
      %872 = vmatpush1.bf16.msra.mxu0 %v850
      %873 = vmatprep.subr.bf16.mxu0 0
      %874 = vmatpush1.bf16.msra.mxu0 %v851
      %875 = vmatprep.subr.bf16.mxu0 0
      %876 = vmatpush1.bf16.msra.mxu0 %v852
      %877 = vmatprep.subr.bf16.mxu0 0
      %878 = vmatpush1.bf16.msra.mxu0 0
      %879 = vmatprep.subr.bf16.mxu0 0
      %880 = vmatpush1.bf16.msra.mxu0 0
      %881 = vmatprep.subr.bf16.mxu0 0
      %882 = vmatpush1.bf16.msra.mxu0 0
      %883 = vmatprep.subr.bf16.mxu0 0
      %884 = vmatpush1.bf16.msra.mxu0 0
      %885 = vmatprep.subr.bf16.mxu0 0
      %886 = vmatpush1.bf16.msra.mxu0 0
      %887 = vmatprep.subr.bf16.mxu0 0
      %888 = vmatpush1.bf16.msra.mxu0 0
      %889 = vmatprep.subr.bf16.mxu0 0
      %890 = vmatpush1.bf16.msra.mxu0 0
      %891 = vmatprep.subr.bf16.mxu0 0
      %892 = vmatpush1.bf16.msra.mxu0 0
      %893 = vmatprep.mubr.bf16.mxu0 0
      %894 = vmatmul.mubr.bf16.gmra.mrb[0].mxu0 %v804
      %v895 = vpop.f32.mrb[0].mxu0
      %v896 = vadd.f32 %v811, %v895
      %v897 = vpop.f32.mrb[0].mxu0
      %v898 = vpop.f32.mrb[0].mxu0
      %v899 = vpop.f32.mrb[0].mxu0
      %900 = vdwg.mxu0
      %v901 = vadd.f32 %v670, %v896
      %v902 = vmax.f32 %v901, 0.0
      %v903 = vld [vmem:[%s5] sm:$0xf]
      %v904 = vld [vmem:[%s5 + $0x4] sm:$0xf]
      %v905 = vld [vmem:[%s5 + $0x8] sm:$0xf]
      %v906 = vld [vmem:[%s5 + $0xc] sm:$0xf]
      %v907 = vld [vmem:[%s5 + $0x10] sm:$0xf]
      %v908 = vld [vmem:[%s5 + $0x14] sm:$0xf]
      %v909 = vld [vmem:[%s5 + $0x18] sm:$0xf]
      %v910 = vld [vmem:[%s5 + $0x1c] sm:$0xf]
      %v911 = vld [vmem:[%s5 + $0x20] sm:$0xf]
      %v912 = vld [vmem:[%s5 + $0x24] sm:$0xf]
      %v913 = vld [vmem:[%s5 + $0x28] sm:$0xf]
      %v914 = vld [vmem:[%s5 + $0x2c] sm:$0xf]
      %v915 = vld [vmem:[%s5 + $0x30] sm:$0xf]
      %v916 = vld [vmem:[%s5 + $0x34] sm:$0xf]
      %v917 = vld [vmem:[%s5 + $0x38] sm:$0xf]
      %v918 = vld [vmem:[%s5 + $0x3c] sm:$0xf]
      %v919 = vpack.c.bf16 %v902, %v902
      %v920 = vld [vmem:[%s6] sm:$0x1]
      %v922 = vlaneseq
      %v923 = vshrl.u32 %v922, 7
      %v924 = vsub.s32 0, %v923
      %v925 = vrot.slane %v920, %v924
      %v943 = vunpack.c.l.b16 %v903
      %v944 = vunpack.c.l.b16 %v904
      %v945 = vunpack.c.l.b16 %v905
      %v946 = vunpack.c.l.b16 %v906
      %v947 = vunpack.c.l.b16 %v907
      %v948 = vunpack.c.l.b16 %v908
      %v949 = vunpack.c.l.b16 %v909
      %v950 = vunpack.c.l.b16 %v910
      %v951 = vunpack.c.l.b16 %v911
      %v952 = vunpack.c.l.b16 %v912
      %v953 = vunpack.c.l.b16 %v913
      %v954 = vunpack.c.l.b16 %v914
      %v955 = vunpack.c.l.b16 %v915
      %v956 = vunpack.c.l.b16 %v916
      %v957 = vunpack.c.l.b16 %v917
      %v958 = vunpack.c.l.b16 %v918
      %v959 = vpack.c.b16 %v944, %v943
      %v960 = vpack.c.b16 %v946, %v945
      %v961 = vpack.c.b16 %v948, %v947
      %v962 = vpack.c.b16 %v950, %v949
      %v963 = vpack.c.b16 %v952, %v951
      %v964 = vpack.c.b16 %v954, %v953
      %v965 = vpack.c.b16 %v956, %v955
      %v966 = vpack.c.b16 %v958, %v957
      %975 = vmatprep.subr.bf16.mxu0 0
      %976 = vmatpush1.bf16.msra.mxu0 %v959
      %977 = vmatprep.subr.bf16.mxu0 0
      %978 = vmatpush1.bf16.msra.mxu0 %v960
      %979 = vmatprep.subr.bf16.mxu0 0
      %980 = vmatpush1.bf16.msra.mxu0 %v961
      %981 = vmatprep.subr.bf16.mxu0 0
      %982 = vmatpush1.bf16.msra.mxu0 %v962
      %983 = vmatprep.subr.bf16.mxu0 0
      %984 = vmatpush1.bf16.msra.mxu0 %v963
      %985 = vmatprep.subr.bf16.mxu0 0
      %986 = vmatpush1.bf16.msra.mxu0 %v964
      %987 = vmatprep.subr.bf16.mxu0 0
      %988 = vmatpush1.bf16.msra.mxu0 %v965
      %989 = vmatprep.subr.bf16.mxu0 0
      %990 = vmatpush1.bf16.msra.mxu0 %v966
      %991 = vmatprep.subr.bf16.mxu0 0
      %992 = vmatpush1.bf16.msra.mxu0 0
      %993 = vmatprep.subr.bf16.mxu0 0
      %994 = vmatpush1.bf16.msra.mxu0 0
      %995 = vmatprep.subr.bf16.mxu0 0
      %996 = vmatpush1.bf16.msra.mxu0 0
      %997 = vmatprep.subr.bf16.mxu0 0
      %998 = vmatpush1.bf16.msra.mxu0 0
      %999 = vmatprep.subr.bf16.mxu0 0
      %1000 = vmatpush1.bf16.msra.mxu0 0
      %1001 = vmatprep.subr.bf16.mxu0 0
      %1002 = vmatpush1.bf16.msra.mxu0 0
      %1003 = vmatprep.subr.bf16.mxu0 0
      %1004 = vmatpush1.bf16.msra.mxu0 0
      %1005 = vmatprep.subr.bf16.mxu0 0
      %1006 = vmatpush1.bf16.msra.mxu0 0
      %1007 = vmatprep.mubr.bf16.mxu0 0
      %1008 = vmatmul.mubr.bf16.gmra.mrb[0].mxu0 %v919
      %v1009 = vpop.f32.mrb[0].mxu0
      %v1010 = vadd.f32 %v925, %v1009
      %v1011 = vpop.f32.mrb[0].mxu0
      %v1012 = vpop.f32.mrb[0].mxu0
      %v1013 = vpop.f32.mrb[0].mxu0
      %1014 = vdwg.mxu0
      %v1015 = vmul.f32 %v1010, %v1010
      %v1016 = vld [vmem:[%s7] sm:$0xff]
      %vm1017 = vcmask 64512
      %v1019 = vsel %vm1017, %v1015, 0
      %1021 = vmatprep.subr.mxu0 0.0
      %1022 = vmatpush1.msra.mxu0 %v1016
      %1023 = vmatprep.subr.mxu0 0.0
      %1024 = vmatpush1.msra.mxu0 0.0
      %1025 = vmatprep.subr.mxu0 0.0
      %1026 = vmatpush1.msra.mxu0 0.0
      %1027 = vmatprep.subr.mxu0 0.0
      %1028 = vmatpush1.msra.mxu0 0.0
      %1029 = vmatprep.subr.mxu0 0.0
      %1030 = vmatpush1.msra.mxu0 0.0
      %1031 = vmatprep.subr.mxu0 0.0
      %1032 = vmatpush1.msra.mxu0 0.0
      %1033 = vmatprep.subr.mxu0 0.0
      %1034 = vmatpush1.msra.mxu0 0.0
      %1035 = vmatprep.subr.mxu0 0.0
      %1036 = vmatpush1.msra.mxu0 0.0
      %1037 = vmatprep.subr.mxu0 0.0
      %1038 = vmatpush1.msra.mxu0 0.0
      %1039 = vmatprep.subr.mxu0 0.0
      %1040 = vmatpush1.msra.mxu0 0.0
      %1041 = vmatprep.subr.mxu0 0.0
      %1042 = vmatpush1.msra.mxu0 0.0
      %1043 = vmatprep.subr.mxu0 0.0
      %1044 = vmatpush1.msra.mxu0 0.0
      %1045 = vmatprep.subr.mxu0 0.0
      %1046 = vmatpush1.msra.mxu0 0.0
      %1047 = vmatprep.subr.mxu0 0.0
      %1048 = vmatpush1.msra.mxu0 0.0
      %1049 = vmatprep.subr.mxu0 0.0
      %1050 = vmatpush1.msra.mxu0 0.0
      %1051 = vmatprep.subr.mxu0 0.0
      %1052 = vmatpush1.msra.mxu0 0.0
      %1053 = vmatprep.subr.mxu0 0.0
      %1054 = vmatpush1.msra.mxu0 0.0
      %1055 = vmatprep.subr.mxu0 0.0
      %1056 = vmatpush1.msra.mxu0 0.0
      %1057 = vmatprep.subr.mxu0 0.0
      %1058 = vmatpush1.msra.mxu0 0.0
      %1059 = vmatprep.subr.mxu0 0.0
      %1060 = vmatpush1.msra.mxu0 0.0
      %1061 = vmatprep.subr.mxu0 0.0
      %1062 = vmatpush1.msra.mxu0 0.0
      %1063 = vmatprep.subr.mxu0 0.0
      %1064 = vmatpush1.msra.mxu0 0.0
      %1065 = vmatprep.subr.mxu0 0.0
      %1066 = vmatpush1.msra.mxu0 0.0
      %1067 = vmatprep.subr.mxu0 0.0
      %1068 = vmatpush1.msra.mxu0 0.0
      %1069 = vmatprep.subr.mxu0 0.0
      %1070 = vmatpush1.msra.mxu0 0.0
      %1071 = vmatprep.subr.mxu0 0.0
      %1072 = vmatpush1.msra.mxu0 0.0
      %1073 = vmatprep.subr.mxu0 0.0
      %1074 = vmatpush1.msra.mxu0 0.0
      %1075 = vmatprep.subr.mxu0 0.0
      %1076 = vmatpush1.msra.mxu0 0.0
      %1077 = vmatprep.subr.mxu0 0.0
      %1078 = vmatpush1.msra.mxu0 0.0
      %1079 = vmatprep.subr.mxu0 0.0
      %1080 = vmatpush1.msra.mxu0 0.0
      %1081 = vmatprep.subr.mxu0 0.0
      %1082 = vmatpush1.msra.mxu0 0.0
      %1083 = vmatprep.subr.mxu0 0.0
      %1084 = vmatpush1.msra.mxu0 0.0
      %1085 = vmatprep.mubr.f32.mxu0 0.0
      %1086 = vmatmul.mubr.f32.gmra.mrb[0].mxu0 %v1019
      %v1087 = vpop.f32.mrb[0].mxu0
      %v1088 = vadd.f32 0.0, %v1087
      %v1089 = vpop.f32.mrb[0].mxu0
      %1090 = vdwg.mxu0
      %v1091 = vmax.f32 %v1088, 1e-08
      %v1092 = vrsqrt.pop %v1091
      %1093 = vst.msk [vmem:[%s303] sm:$0xff] %vm1017, %v1010
      %v1094 = vmul.f32 %v1010, %v1092
      %1096 = vrot.lane.b32.xlu0 %v1094, 8
      %v1097 = vpop.permute.xlu0 %1096
      %vm1099 = vcmask 130112
      %1100 = vst.msk [vmem:[%s303] sm:$0xff] %vm1099, %v1097
      %p1101 = scmp.lt.s32.totalorder %s19, 1
      %s1102 = scalar_select %p1101, %s19, 1
      %s1103 = smul.addr %s1102, 8
      %s1104 = scalar_lea.vmem %s8, %s1103
      // Predicated region
      $region53: #{angle_resnet_forward.1} parent=51 // pred_check
        %p1105 = pneg %p210
      $region54: #{angle_resnet_forward.1} parent=51 // pred_check_branch
        %1107 = sbr.rel (%p1105) target = $region56
      $region55: #{angle_resnet_forward.1} parent=51 // pred_region
        _
      $region56: #{angle_resnet_forward.1} parent=51 // pred_fallthru
        _
    $region52: #{angle_resnet_forward.1} parent=5 // pred_fallthru
      _
    %p1108 = scmp.le.s32.totalorder 2, %s14
    // Predicated region
    $region57: #{angle_resnet_forward.1} parent=5 // pred_check
      %p1109 = pneg %p1108
    $region58: #{angle_resnet_forward.1} parent=5 // pred_check_branch
      %1111 = sbr.rel (%p1109) target = $region60
    $region59: #{angle_resnet_forward.1} parent=5 // pred_region
      %s1112 = ssub.s32 %s14, 2
      // Predicated region
      $region61: #{angle_resnet_forward.1} parent=59 // pred_check
        %p1113 = pneg %p216
      $region62: #{angle_resnet_forward.1} parent=59 // pred_check_branch
        %1115 = sbr.rel (%p1113) target = $region64
      $region63: #{angle_resnet_forward.1} parent=59 // pred_region
        %p1116 = scmp.lt.s32.totalorder %s20, 1
        %s1117 = scalar_select %p1116, %s20, 1
        %s1118 = smul.addr %s1117, 8
        %s1119 = scalar_lea.vmem %s8, %s1118
      $region64: #{angle_resnet_forward.1} parent=59 // pred_fallthru
        _
    $region60: #{angle_resnet_forward.1} parent=5 // pred_fallthru
      _
  $region6: #{angle_resnet_forward.1} parent=0 // loop_footer
    %s18 = sadd.s32 1, %s14
  $region7: #{angle_resnet_forward.1} parent=0 // loop_footer_branch
    %13 = sbr.rel target = $region3
  $region8: #{angle_resnet_forward.1} parent=0 // loop_exit
    _

</llo_original>
